<compile_context>
chip_gen: v6e
topology: v6e:2x2x1
jax: 0.10.0
libtpu: 0.0.40
codegen_flags: <defaults>
</compile_context>

<pallas_src>
import functools

import jax
import jax.numpy as jnp
from jax import lax
from jax.experimental import pallas as pl
from jax.experimental.pallas import tpu as pltpu

BETA = 1e-4
SIGMA_INIT = 0.06
_LANES = 128  # lane-dense scalar output / accumulator width


# ----------------------------------------------------------------------------
# Small host-side helpers
# ----------------------------------------------------------------------------
def _round_up(x, m):
    return (x + m - 1) // m * m


def _vmem_limit_bytes():
    """75% of physical VMEM (96 MiB on v5e/v6e, 48 MiB on v7x, 48 MiB fallback)."""
    phys = 64 << 20  # conservative default = v7x per-core physical VMEM
    try:
        info = pltpu.get_tpu_info()
        cap = getattr(info, "vmem_capacity_bytes", None)
        if cap:
            phys = int(cap)
    except Exception:
        pass
    return int((phys // 4) * 3)


def _pick_row_tile(n_rows, bytes_per_row, budget_bytes, cap=1024):
    """Largest multiple-of-8 row tile whose double-buffered stream fits budget."""
    rows = budget_bytes // (2 * max(int(bytes_per_row), 1))
    rows = max(8, (rows // 8) * 8)
    rows = min(rows, cap, _round_up(max(int(n_rows), 1), 8))
    return int(rows)


def _maybe_pad_rows(x, n_pad):
    n = x.shape[0]
    if n_pad == n:
        return x  # no extra HBM copy in the aligned (common production) case
    return jnp.pad(x, ((0, n_pad - n), (0, 0)))


# ----------------------------------------------------------------------------
# In-kernel helpers
# ----------------------------------------------------------------------------
def _stable_softplus(x):
    # softplus(x) = max(x, 0) + log1p(exp(-|x|)); no overflow for large x.
    return jnp.maximum(x, 0.0) + jnp.log1p(jnp.exp(-jnp.abs(x)))


def _ce_partial_sum(logits, tgt, row_offset, n_valid):
    """Sum-reduced cross entropy of one (tm, C) f32 tile; pad rows masked.

    All intermediates kept (tm, 1); the row-max cancels between lse and the
    picked logit, saving one VPU pass and a 1-D relayout.
    """
    tm, c = logits.shape
    m = jnp.max(logits, axis=-1, keepdims=True)                       # (tm,1)
    shifted = logits - m                                              # (tm,C)
    lse = jnp.log(jnp.sum(jnp.exp(shifted), axis=-1, keepdims=True))  # (tm,1)
    class_ids = lax.broadcasted_iota(jnp.int32, (tm, c), 1)
    picked = jnp.sum(jnp.where(class_ids == tgt, shifted, 0.0),
                     axis=-1, keepdims=True)                          # (tm,1)
    rows = lax.broadcasted_iota(jnp.int32, (tm, 1), 0) + row_offset
    valid = rows < n_valid
    return jnp.sum(jnp.where(valid, lse - picked, 0.0))


def _ucl_reg_partial(cur_mu, old_mu, pack, row_offset, n_valid, *,
                     sigma_init, beta):
    """UCL regularizer over one (to, I) row tile of a BayesLinear layer.

    pack: (to, 4) f32 columns = [cur_rho, old_rho, cur_bias, old_bias].
    Pad rows of mu / bias are zero (=> zero l1/l2 contribution); the variance
    term is masked explicitly.
    """
    s_init = jnp.float32(sigma_init)
    cur_rho, old_rho = pack[:, 0:1], pack[:, 1:2]
    cur_b, old_b = pack[:, 2:3], pack[:, 3:4]

    sigma_old = _stable_softplus(old_rho)          # (to,1)
    sigma_cur = _stable_softplus(cur_rho)          # (to,1)
    inv_sigma_old = 1.0 / sigma_old                # exact; only O elements
    strength = s_init * inv_sigma_old
    # num_layers == 1: no max() with the previous layer's strength.
    # TODO(synk): multi-layer case needs max(strength, strength_prev_layer).
    log_sigma_old = jnp.log(sigma_old)
    log_sigma_cur = jnp.log(sigma_cur)

    # weight terms (padded mu rows are zero -> zero contribution)
    mu_diff = cur_mu - old_mu                      # (to,I)
    t1 = strength * mu_diff
    l2_mu = jnp.sum(t1 * t1)
    w_scaled = old_mu * inv_sigma_old
    l1_w = s_init * s_init * jnp.sum(jnp.abs(w_scaled * w_scaled * mu_diff))

    # bias terms (padded bias rows are zero -> zero contribution)
    b_diff = cur_b - old_b
    t1b = strength * b_diff
    l2_b = jnp.sum(t1b * t1b)
    b_scaled = old_b * inv_sigma_old
    l1_b = s_init * s_init * jnp.sum(jnp.abs(b_scaled * b_scaled * b_diff))

    # variance (third) term: nonzero even for pad rows -> explicit row mask
    rows = lax.broadcasted_iota(jnp.int32, (pack.shape[0], 1), 0) + row_offset
    validf = (rows < n_valid).astype(jnp.float32)
    ratio = sigma_cur * inv_sigma_old
    term3 = ratio * ratio - 2.0 * (log_sigma_cur - log_sigma_old)
    term4 = sigma_cur * sigma_cur - 2.0 * log_sigma_cur
    third = jnp.sum(validf * (term3 + term4))

    return (0.5 * (l2_mu + l2_b)
            + (l1_w + l1_b)
            + 0.5 * jnp.float32(beta) * third)


# ----------------------------------------------------------------------------
# Kernels
# ----------------------------------------------------------------------------
def _ce_kernel(logits_ref, target_ref, out_ref, acc_ref, *,
               tm, n_rows, batch_size):
    """Row-tiled CE-only kernel. grid = (num_ce_tiles,)."""
    g = pl.program_id(0)

    @pl.when(g == 0)
    def _():
        acc_ref[...] = jnp.zeros_like(acc_ref)

    logits = logits_ref[...].astype(jnp.float32)
    tgt = target_ref[pl.ds(pl.multiple_of(g * tm, 8), tm), :]
    ce = _ce_partial_sum(logits, tgt, g * tm, n_rows)
    acc_ref[...] += jnp.full(acc_ref.shape, ce / jnp.float32(batch_size),
                             dtype=jnp.float32)

    @pl.when(g == pl.num_programs(0) - 1)
    def _():
        out_ref[...] = acc_ref[...]


def _fused_kernel(logits_ref, target_ref, cur_mu_ref, old_mu_ref, pack_ref,
                  out_ref, acc_ref, *, tm, to, n_ce_tiles, n_rows, o_rows,
                  batch_size, sigma_init, beta):
    """Two-phase fused kernel. grid = (num_ce_tiles + num_reg_tiles,).

    Steps [0, n_ce_tiles): CE over (tm, C) logit tiles.
    Steps [n_ce_tiles, end): UCL regularizer over (to, I) mu tiles.
    """
    g = pl.program_id(0)

    @pl.when(g == 0)
    def _():
        acc_ref[...] = jnp.zeros_like(acc_ref)

    @pl.when(g < n_ce_tiles)
    def _():
        logits = logits_ref[...].astype(jnp.float32)
        tgt = target_ref[pl.ds(pl.multiple_of(g * tm, 8), tm), :]
        ce = _ce_partial_sum(logits, tgt, g * tm, n_rows)
        acc_ref[...] += jnp.full(acc_ref.shape, ce / jnp.float32(batch_size),
                                 dtype=jnp.float32)

    @pl.when(g >= n_ce_tiles)
    def _():
        r = g - n_ce_tiles
        pack = pack_ref[pl.ds(pl.multiple_of(r * to, 8), to), :].astype(
            jnp.float32)
        reg = _ucl_reg_partial(cur_mu_ref[...].astype(jnp.float32),
                               old_mu_ref[...].astype(jnp.float32),
                               pack, r * to, o_rows,
                               sigma_init=sigma_init, beta=beta)
        acc_ref[...] += jnp.full(acc_ref.shape, reg, dtype=jnp.float32)

    @pl.when(g == pl.num_programs(0) - 1)
    def _():
        out_ref[...] = acc_ref[...]


# ----------------------------------------------------------------------------
# Wrapper (matches UCLLoss.forward, num_layers = 1)
# ----------------------------------------------------------------------------
def ucl_loss(output, target, new_model=None, old_model=None,
             beta=BETA, sigma_init=SIGMA_INIT, stream_dtype=None,
             ce_rows_per_tile=None, reg_rows_per_tile=None):
    """UCLLoss forward.

    stream_dtype: optional dtype (e.g. jnp.bfloat16) used to stream the big
      arrays (logits, weight_mu) over HBM; math stays f32 in-kernel.
      Recommended for production (halves HBM bytes of this mem-bound kernel).
    ce_rows_per_tile / reg_rows_per_tile: optional row-tile overrides
      (rounded up to a multiple of 8); default is VMEM-budget derived.
    """
    n, c = output.shape
    logits = output if stream_dtype is None else output.astype(stream_dtype)
    tgt = target.reshape(n, 1).astype(jnp.int32)

    vmem_limit = _vmem_limit_bytes()
    stream_budget = vmem_limit // 2  # headroom for resident blocks + scratch

    out_shape = jax.ShapeDtypeStruct((1, _LANES), jnp.float32)
    out_spec = pl.BlockSpec((1, _LANES), lambda g: (0, 0))
    lg_bytes = jnp.dtype(logits.dtype).itemsize

    # ---------------- CE-only path ----------------
    if new_model is None or old_model is None:
        tm = (_round_up(int(ce_rows_per_tile), 8) if ce_rows_per_tile
              else _pick_row_tile(n, c * lg_bytes, stream_budget))
        n_pad = _round_up(n, tm)
        logits_p = _maybe_pad_rows(logits, n_pad)
        tgt_p = _maybe_pad_rows(tgt, n_pad)
        n_ce = n_pad // tm

        kern = functools.partial(_ce_kernel, tm=tm, n_rows=n, batch_size=n)
        res = pl.pallas_call(
            kern,
            out_shape=out_shape,
            grid=(n_ce,),
            in_specs=[pl.BlockSpec((tm, c), lambda g: (g, 0)),
                      pl.BlockSpec((n_pad, 1), lambda g: (0, 0))],  # resident
            out_specs=out_spec,
            scratch_shapes=[pltpu.VMEM((1, _LANES), jnp.float32)],
            compiler_params=pltpu.CompilerParams(
                dimension_semantics=("arbitrary",),
                vmem_limit_bytes=vmem_limit),
        )(logits_p, tgt_p)
        return res[0, 0]

    # ---------------- Fused CE + UCL regularizer path ----------------
    assert len(new_model) == 1 and len(old_model) == 1, "num_layers == 1 only"
    nl, ol = new_model[0], old_model[0]
    o, i = nl["weight_mu"].shape
    cur_mu, old_mu = nl["weight_mu"], ol["weight_mu"]
    if stream_dtype is not None:
        cur_mu = cur_mu.astype(stream_dtype)
        old_mu = old_mu.astype(stream_dtype)
    mu_bytes = jnp.dtype(cur_mu.dtype).itemsize

    # Pack the four per-output-row vectors into one small f32 (O, 4) block
    # (resident, DMA'd once): [cur_rho, old_rho, cur_bias, old_bias].
    pack = jnp.stack(
        [nl["weight_rho"].reshape(o).astype(jnp.float32),
         ol["weight_rho"].reshape(o).astype(jnp.float32),
         nl["bias"].reshape(o).astype(jnp.float32),
         ol["bias"].reshape(o).astype(jnp.float32)],
        axis=1)

    tm = (_round_up(int(ce_rows_per_tile), 8) if ce_rows_per_tile
          else _pick_row_tile(n, c * lg_bytes, stream_budget // 2))
    to = (_round_up(int(reg_rows_per_tile), 8) if reg_rows_per_tile
          else _pick_row_tile(o, 2 * i * mu_bytes, stream_budget // 2))

    n_pad, o_pad = _round_up(n, tm), _round_up(o, to)
    logits_p = _maybe_pad_rows(logits, n_pad)
    tgt_p = _maybe_pad_rows(tgt, n_pad)
    cur_mu_p = _maybe_pad_rows(cur_mu, o_pad)
    old_mu_p = _maybe_pad_rows(old_mu, o_pad)
    pack_p = _maybe_pad_rows(pack, o_pad)

    n_ce, n_reg = n_pad // tm, o_pad // to

    kern = functools.partial(
        _fused_kernel, tm=tm, to=to, n_ce_tiles=n_ce, n_rows=n, o_rows=o,
        batch_size=n, sigma_init=float(sigma_init), beta=float(beta))

    res = pl.pallas_call(
        kern,
        out_shape=out_shape,
        grid=(n_ce + n_reg,),
        in_specs=[
            # Clamped index maps: the inactive phase keeps the same block index
            # so Pallas skips re-fetching it.
            pl.BlockSpec((tm, c), lambda g: (jnp.minimum(g, n_ce - 1), 0)),
            pl.BlockSpec((n_pad, 1), lambda g: (0, 0)),   # resident targets
            pl.BlockSpec((to, i), lambda g: (jnp.maximum(g - n_ce, 0), 0)),
            pl.BlockSpec((to, i), lambda g: (jnp.maximum(g - n_ce, 0), 0)),
            pl.BlockSpec((o_pad, 4), lambda g: (0, 0)),   # resident pack
        ],
        out_specs=out_spec,
        scratch_shapes=[pltpu.VMEM((1, _LANES), jnp.float32)],
        compiler_params=pltpu.CompilerParams(
            dimension_semantics=("arbitrary",),
            vmem_limit_bytes=vmem_limit),
    )(logits_p, tgt_p, cur_mu_p, old_mu_p, pack_p)
    return res[0, 0]


# ----------------------------------------------------------------------------
# Pure-JAX references for verification
# ----------------------------------------------------------------------------
def ref_ce(output, target):
    logits = output.astype(jnp.float32)
    lse = jax.scipy.special.logsumexp(logits, axis=-1)
    picked = jnp.take_along_axis(logits, target[:, None].astype(jnp.int32),
                                 axis=-1)[:, 0]
    return jnp.sum(lse - picked) / logits.shape[0]


def ref_loss(output, target, new_model, old_model, beta=BETA,
             sigma_init=SIGMA_INIT):
    nll = ref_ce(output, target)
    nl, ol = new_model[0], old_model[0]
    s_init = jnp.float32(sigma_init)
    sigma_old = jax.nn.softplus(ol["weight_rho"].astype(jnp.float32))
    sigma_cur = jax.nn.softplus(nl["weight_rho"].astype(jnp.float32))
    strength = s_init / sigma_old
    mu_diff = nl["weight_mu"].astype(jnp.float32) - ol["weight_mu"].astype(jnp.float32)
    l2_mu = jnp.sum((strength * mu_diff) ** 2)
    l1_w = s_init ** 2 * jnp.sum(
        jnp.abs((ol["weight_mu"].astype(jnp.float32) / sigma_old) ** 2 * mu_diff))
    ratio = sigma_cur / sigma_old
    third = jnp.sum(ratio ** 2 - 2 * jnp.log(ratio)
                    + sigma_cur ** 2 - 2 * jnp.log(sigma_cur))
    b_diff = nl["bias"] - ol["bias"]
    strength_b = jnp.squeeze(strength)
    sigma_old_b = jnp.squeeze(sigma_old)
    l2_b = jnp.sum((strength_b * b_diff) ** 2)
    l1_b = s_init ** 2 * jnp.sum(
        jnp.abs((ol["bias"] / sigma_old_b) ** 2 * b_diff))
    reg = 0.5 * (l2_mu + l2_b) + (l1_w + l1_b) + 0.5 * beta * third
    return nll + reg


if __name__ == "__main__":
    key = jax.random.PRNGKey(0)
    kx, kt, k1, k2, k3, k4, k5, k6 = jax.random.split(key, 8)

    # Deliberately non-multiples of 8 to exercise padding + in-kernel masking.
    N, C = 30, 32        # batch, classes
    O, I = 13, 32        # BayesLinear out/in features

    logits = jax.random.normal(kx, (N, C), dtype=jnp.float32)
    targets = jax.random.randint(kt, (N,), 0, C, dtype=jnp.int32)

    old_model = [dict(
        weight_mu=0.1 * jax.random.normal(k1, (O, I), dtype=jnp.float32),
        weight_rho=-3.0 + 0.1 * jax.random.normal(k2, (O, 1), dtype=jnp.float32),
        bias=0.1 * jax.random.normal(k3, (O,), dtype=jnp.float32),
    )]
    new_model = [dict(
        weight_mu=old_model[0]["weight_mu"]
        + 0.05 * jax.random.normal(k4, (O, I), dtype=jnp.float32),
        weight_rho=old_model[0]["weight_rho"]
        + 0.05 * jax.random.normal(k5, (O, 1), dtype=jnp.float32),
        bias=old_model[0]["bias"]
        + 0.05 * jax.random.normal(k6, (O,), dtype=jnp.float32),
    )]

    ref_plain = ref_ce(logits, targets)
    ref_full = ref_loss(logits, targets, new_model, old_model)

    # 1) CE-only path, auto tile size.
    loss_plain = ucl_loss(logits, targets)
    jax.block_until_ready(loss_plain)
    assert jnp.allclose(loss_plain, ref_plain, rtol=1e-5, atol=1e-5), (
        loss_plain, ref_plain)

    # 2) CE-only path, forced small tiles (multi-tile accumulation + masking).
    loss_plain_t = ucl_loss(logits, targets, ce_rows_per_tile=8)
    jax.block_until_ready(loss_plain_t)
    assert jnp.allclose(loss_plain_t, ref_plain, rtol=1e-5, atol=1e-5), (
        loss_plain_t, ref_plain)

    # 3) Fused path, auto tile size (single CE tile + single reg tile).
    loss_full = ucl_loss(logits, targets, new_model, old_model)
    jax.block_until_ready(loss_full)
    assert jnp.allclose(loss_full, ref_full, rtol=1e-4, atol=1e-5), (
        loss_full, ref_full)
    assert bool(jnp.isfinite(loss_full))

    # 4) Fused path, forced small tiles -> two-phase grid with several tiles
    #    per phase, pad rows masked in both phases.
    loss_full_t = ucl_loss(logits, targets, new_model, old_model,
                           ce_rows_per_tile=8, reg_rows_per_tile=8)
    jax.block_until_ready(loss_full_t)
    assert jnp.allclose(loss_full_t, ref_full, rtol=1e-4, atol=1e-5), (
        loss_full_t, ref_full)

    # 5) bf16 HBM streaming of the big arrays; compare against a reference fed
    #    the same bf16-rounded logits / mu (in-kernel math is f32 in both).
    def _round_bf16(x):
        return x.astype(jnp.bfloat16).astype(jnp.float32)
    nm_r = [dict(weight_mu=_round_bf16(new_model[0]["weight_mu"]),
                 weight_rho=new_model[0]["weight_rho"],
                 bias=new_model[0]["bias"])]
    om_r = [dict(weight_mu=_round_bf16(old_model[0]["weight_mu"]),
                 weight_rho=old_model[0]["weight_rho"],
                 bias=old_model[0]["bias"])]
    ref_bf16 = ref_loss(_round_bf16(logits), targets, nm_r, om_r)
    loss_bf16 = ucl_loss(logits, targets, new_model, old_model,
                         stream_dtype=jnp.bfloat16)
    jax.block_until_ready(loss_bf16)
    assert jnp.allclose(loss_bf16, ref_bf16, rtol=1e-3, atol=1e-3), (
        loss_bf16, ref_bf16)

    print("KERNEL_OK")
</pallas_src>

<mosaic_0001>
module attributes {stable_mosaic.version = 11 : i64} {
  func.func @_ce_kernel(%arg0: i32, %arg1: memref<32x32xf32, #tpu.memory_space<vmem>>, %arg2: memref<32x1xi32, #tpu.memory_space<vmem>>, %arg3: memref<1x128xf32, #tpu.memory_space<vmem>>, %arg4: memref<1x128xf32, #tpu.memory_space<vmem>>) attributes {dimension_semantics = [#tpu.dimension_semantics<arbitrary>], iteration_bounds = array<i64: 1>, scalar_prefetch = 0 : i64, scratch_operands = 1 : i64, tpu.core_type = #tpu.core_type<tc>, window_params = [{transform_indices = @transform_0, window_bounds = array<i64: 32, 32>}, {pipeline_mode = #tpu.pipeline_mode<synchronous>, transform_indices = @transform_1, window_bounds = array<i64: 32, 1>}, {pipeline_mode = #tpu.pipeline_mode<synchronous>, transform_indices = @transform_2, window_bounds = array<i64: 1, 128>}]} {
    %c0_i32 = arith.constant 0 : i32
    %0 = arith.cmpi eq, %arg0, %c0_i32 : i32
    %1 = arith.extui %0 : i1 to i32
    %c0_i32_0 = arith.constant 0 : i32
    %2 = arith.cmpi ne, %1, %c0_i32_0 : i32
    scf.if %2 {
      %cst_16 = arith.constant 0.000000e+00 : f32
      %44 = vector.broadcast %cst_16 : f32 to vector<1x128xf32>
      %c0_17 = arith.constant 0 : index
      %c0_18 = arith.constant 0 : index
      %45 = vector.load %arg4[%c0_17, %c0_18] : memref<1x128xf32, #tpu.memory_space<vmem>>, vector<1x128xf32>
      tpu.vector_store %arg4[%c0_17, %c0_18], %44 {strides = array<i32>} : memref<1x128xf32, #tpu.memory_space<vmem>>, vector<1x128xf32>,
    } else {
    }
    %c0 = arith.constant 0 : index
    %c0_1 = arith.constant 0 : index
    %3 = vector.load %arg1[%c0, %c0_1] : memref<32x32xf32, #tpu.memory_space<vmem>>, vector<32x32xf32>
    %c32_i32 = arith.constant 32 : i32
    %4 = arith.muli %arg0, %c32_i32 : i32
    %5 = tpu.assume_multiple %4, 8 : i32
    %6 = arith.index_cast %5 : i32 to index
    %c0_2 = arith.constant 0 : index
    %7 = vector.load %arg2[%6, %c0_2] : memref<32x1xi32, #tpu.memory_space<vmem>>, vector<32x1xi32>
    %c32_i32_3 = arith.constant 32 : i32
    %8 = arith.muli %arg0, %c32_i32_3 : i32
    %cst = arith.constant dense<0xFF800000> : vector<32xf32>
    %9 = vector.multi_reduction <maximumf>, %3, %cst [1] : vector<32x32xf32> to vector<32xf32>
    %10 = vector.shape_cast %9 : vector<32xf32> to vector<32x1xf32>
    %11 = vector.broadcast %10 : vector<32x1xf32> to vector<32x32xf32>
    %12 = arith.subf %3, %11 : vector<32x32xf32>
    %13 = math.exp %12 : vector<32x32xf32>
    %cst_4 = arith.constant dense<0.000000e+00> : vector<32xf32>
    %14 = vector.multi_reduction <add>, %13, %cst_4 [1] : vector<32x32xf32> to vector<32xf32>
    %15 = vector.shape_cast %14 : vector<32xf32> to vector<32x1xf32>
    %16 = math.log %15 : vector<32x1xf32>
    %17 = tpu.iota {dimensions = array<i32: 1>} : vector<32x32xi32>
    %18 = vector.broadcast %7 : vector<32x1xi32> to vector<32x32xi32>
    %19 = arith.cmpi eq, %17, %18 : vector<32x32xi32>
    %cst_5 = arith.constant 0.000000e+00 : f32
    %20 = vector.broadcast %cst_5 : f32 to vector<32x32xf32>
    %21 = arith.select %19, %12, %20 : vector<32x32xi1>, vector<32x32xf32>
    %cst_6 = arith.constant dense<0.000000e+00> : vector<32xf32>
    %22 = vector.multi_reduction <add>, %21, %cst_6 [1] : vector<32x32xf32> to vector<32xf32>
    %23 = vector.shape_cast %22 : vector<32xf32> to vector<32x1xf32>
    %24 = tpu.iota {dimensions = array<i32: 0>} : vector<32x1xi32>
    %25 = vector.broadcast %8 : i32 to vector<32x1xi32>
    %26 = arith.addi %24, %25 : vector<32x1xi32>
    %c30_i32 = arith.constant 30 : i32
    %27 = vector.broadcast %c30_i32 : i32 to vector<32x1xi32>
    %28 = arith.cmpi slt, %26, %27 : vector<32x1xi32>
    %29 = arith.subf %16, %23 : vector<32x1xf32>
    %cst_7 = arith.constant 0.000000e+00 : f32
    %30 = vector.broadcast %cst_7 : f32 to vector<32x1xf32>
    %31 = arith.select %28, %29, %30 : vector<32x1xi1>, vector<32x1xf32>
    %32 = vector.shape_cast %31 : vector<32x1xf32> to vector<1x32x1xf32>
    %cst_8 = arith.constant dense<0.000000e+00> : vector<1xf32>
    %33 = vector.multi_reduction <add>, %32, %cst_8 [1, 2] : vector<1x32x1xf32> to vector<1xf32>
    %34 = vector.shape_cast %33 : vector<1xf32> to vector<1x1x1xf32>
    %35 = vector.extract %34[0, 0, 0] : f32 from vector<1x1x1xf32>
    %c0_9 = arith.constant 0 : index
    %c0_10 = arith.constant 0 : index
    %36 = vector.load %arg4[%c0_9, %c0_10] : memref<1x128xf32, #tpu.memory_space<vmem>>, vector<1x128xf32>
    %cst_11 = arith.constant 3.000000e+01 : f32
    %37 = arith.divf %35, %cst_11 : f32
    %38 = vector.broadcast %37 : f32 to vector<1x128xf32>
    %39 = arith.addf %36, %38 : vector<1x128xf32>
    %c0_12 = arith.constant 0 : index
    %c0_13 = arith.constant 0 : index
    %40 = vector.load %arg4[%c0_12, %c0_13] : memref<1x128xf32, #tpu.memory_space<vmem>>, vector<1x128xf32>
    tpu.vector_store %arg4[%c0_12, %c0_13], %39 {strides = array<i32>} : memref<1x128xf32, #tpu.memory_space<vmem>>, vector<1x128xf32>,
    %c0_i32_14 = arith.constant 0 : i32
    %41 = arith.cmpi eq, %arg0, %c0_i32_14 : i32
    %42 = arith.extui %41 : i1 to i32
    %c0_i32_15 = arith.constant 0 : i32
    %43 = arith.cmpi ne, %42, %c0_i32_15 : i32
    scf.if %43 {
      %c0_16 = arith.constant 0 : index
      %c0_17 = arith.constant 0 : index
      %44 = vector.load %arg4[%c0_16, %c0_17] : memref<1x128xf32, #tpu.memory_space<vmem>>, vector<1x128xf32>
      %c0_18 = arith.constant 0 : index
      %c0_19 = arith.constant 0 : index
      %45 = vector.load %arg3[%c0_18, %c0_19] : memref<1x128xf32, #tpu.memory_space<vmem>>, vector<1x128xf32>
      tpu.vector_store %arg3[%c0_18, %c0_19], %44 {strides = array<i32>} : memref<1x128xf32, #tpu.memory_space<vmem>>, vector<1x128xf32>,
    } else {
    }
    return
  }
  func.func @transform_0(%arg0: i32) -> (i32, i32) {
    %c0_i32 = arith.constant 0 : i32
    %c0_i32_0 = arith.constant 0 : i32
    return %arg0, %c0_i32 : i32, i32
  }
  func.func @transform_1(%arg0: i32) -> (i32, i32) {
    %c0_i32 = arith.constant 0 : i32
    %c0_i32_0 = arith.constant 0 : i32
    %c0_i32_1 = arith.constant 0 : i32
    return %c0_i32, %c0_i32_0 : i32, i32
  }
  func.func @transform_2(%arg0: i32) -> (i32, i32) {
    %c0_i32 = arith.constant 0 : i32
    %c0_i32_0 = arith.constant 0 : i32
    %c0_i32_1 = arith.constant 0 : i32
    return %c0_i32, %c0_i32_0 : i32, i32
  }
}

</mosaic_0001>

<llo_original>
// kernel: tpu_custom_call.1
$region0: #{tpu_custom_call.1}
  #allocation0 [shape = 'u32[]', space=smem, size = 0x4, offset = 0x4, fixed_abs, tag = 'smem constant byte address 0x4 - core index']
  #allocation1 [shape = 'u32[144,128]{1,0:T(1,128)}', space=vmem, size = 0x12000, scoped, tag = 'internal scratch']
  #allocation2 [shape = 'f32[1,128]{1,0:T(1,128)}', space=vmem, size = 0x200, scoped, tag = 'scratch operand']
  %s0 = inlined_call_operand.vmem [shape: f32[32,32], index: 0, kind: input, shape index: {}]
  %s1 = inlined_call_operand.vmem [shape: s32[32,1], index: 1, kind: input, shape index: {}]
  %s2 = inlined_call_operand.hbm [shape: f32[1,128], index: 2, kind: output, shape index: {}]
  %s3 = sld [smem:[#allocation0]]
  $region26: #{tpu_custom_call.1} parent=0
    _
  %s5 = ssub.s32 1, %s3
  %s6 = scalar_select 0, %s5, %s3
  $region1: #{tpu_custom_call.1} parent=0
    #allocation3 [shape = 'u8[512]{0}', space=vmem, size = 0x400, scoped, tag = 'output window, operand 0, single buffered']
    #allocation4 [shape = 's32[1]{0}', space=sflag, size = 0x4, scoped, tag = 'scoped memory for tpu_custom_call.1']
    %7 = vsyncpa [#allocation4], 0
    // Predicated region
    $region2: #{tpu_custom_call.1} parent=1 // pred_check
      _
    $region3: #{tpu_custom_call.1} parent=1 // pred_check_branch
      %9 = sbr.rel (0) target = $region5
    $region4: #{tpu_custom_call.1} parent=1 // pred_region
      _
    $region5: #{tpu_custom_call.1} parent=1 // pred_fallthru
      _
    // Predicated region
    $region6: #{tpu_custom_call.1} parent=1 // pred_check
      _
    $region7: #{tpu_custom_call.1} parent=1 // pred_check_branch
      %11 = sbr.rel (0) target = $region9
    $region8: #{tpu_custom_call.1} parent=1 // pred_region
      _
    $region9: #{tpu_custom_call.1} parent=1 // pred_fallthru
      _
    %p12 = scmp.eq.s32.totalorder 0, 0
    // Predicated region
    $region10: #{tpu_custom_call.1} parent=1 // pred_check
      %p13 = pneg %p12
    $region11: #{tpu_custom_call.1} parent=1 // pred_check_branch
      %15 = sbr.rel (%p13) target = $region13
    $region12: #{tpu_custom_call.1} parent=1 // pred_region
      %16 = vst [vmem:[#allocation2] sm:$0x1] 0.0
    $region13: #{tpu_custom_call.1} parent=1 // pred_fallthru
      _
    %v17 = vld [vmem:[%s0] sm:$0xff]
    %v18 = vld [vmem:[%s0 + $0x8] sm:$0xff]
    %v19 = vld [vmem:[%s0 + $0x10] sm:$0xff]
    %v20 = vld [vmem:[%s0 + $0x18] sm:$0xff]
    %s21 = smul.u32 0, 32
    %s22 = scalar_lea.vmem %s1, %s21
    %v23 = vld [vmem:[%s22] sm:$0xff]
    %v24 = vld [vmem:[%s22 + $0x8] sm:$0xff]
    %v25 = vld [vmem:[%s22 + $0x10] sm:$0xff]
    %v26 = vld [vmem:[%s22 + $0x18] sm:$0xff]
    %vm27 = vcmask 261120
    %v28 = vsel %vm27, %v17, -inf
    %29 = vmax.xlane.f32.xlu0 %v28
    %v30 = vpop.xlane.xlu0 %29
    %v31 = vsel %vm27, %v18, -inf
    %32 = vmax.xlane.f32.xlu0 %v31
    %v33 = vpop.xlane.xlu0 %32
    %v34 = vsel %vm27, %v19, -inf
    %35 = vmax.xlane.f32.xlu0 %v34
    %v36 = vpop.xlane.xlu0 %35
    %v37 = vsel %vm27, %v20, -inf
    %38 = vmax.xlane.f32.xlu0 %v37
    %v39 = vpop.xlane.xlu0 %38
    %v40 = vsub.f32 %v17, %v30
    %v41 = vsub.f32 %v18, %v33
    %v42 = vsub.f32 %v19, %v36
    %v43 = vsub.f32 %v20, %v39
    %v44 = vmul.f32 %v40, 1.442695
    %v45 = vpow.pop %v44
    %v46 = vmul.f32 %v41, 1.442695
    %v47 = vpow.pop %v46
    %v48 = vmul.f32 %v42, 1.442695
    %v49 = vpow.pop %v48
    %v50 = vmul.f32 %v43, 1.442695
    %v51 = vpow.pop %v50
    %v52 = vsel %vm27, %v45, 0.0
    %53 = vadd.xlane.f32.xlu0 %v52
    %v54 = vpop.xlane.xlu0 %53
    %v55 = vsel %vm27, %v47, 0.0
    %56 = vadd.xlane.f32.xlu0 %v55
    %v57 = vpop.xlane.xlu0 %56
    %v58 = vsel %vm27, %v49, 0.0
    %59 = vadd.xlane.f32.xlu0 %v58
    %v60 = vpop.xlane.xlu0 %59
    %v61 = vsel %vm27, %v51, 0.0
    %62 = vadd.xlane.f32.xlu0 %v61
    %v63 = vpop.xlane.xlu0 %62
    %v64 = vlog2.pop %v54
    %v65 = vmul.f32 %v64, 0.6931472
    %v66 = vlog2.pop %v57
    %v67 = vmul.f32 %v66, 0.6931472
    %v68 = vlog2.pop %v60
    %v69 = vmul.f32 %v68, 0.6931472
    %v70 = vlog2.pop %v63
    %v71 = vmul.f32 %v70, 0.6931472
    %v72 = vlaneseq
    %v73 = vand.u32 %v72, 127
    %74 = vset.pattern.permute.xlu0 0
    %75 = vperm.xlu0 %74, %v23
    %v76 = vpop.permute.xlu0 %75
    %77 = vset.pattern.permute.xlu0 0
    %78 = vperm.xlu0 %77, %v24
    %v79 = vpop.permute.xlu0 %78
    %80 = vset.pattern.permute.xlu0 0
    %81 = vperm.xlu0 %80, %v25
    %v82 = vpop.permute.xlu0 %81
    %83 = vset.pattern.permute.xlu0 0
    %84 = vperm.xlu0 %83, %v26
    %v85 = vpop.permute.xlu0 %84
    %vm86 = vcmp.eq.s32.totalorder %v73, %v76
    %vm87 = vcmp.eq.s32.totalorder %v73, %v79
    %vm88 = vcmp.eq.s32.totalorder %v73, %v82
    %vm89 = vcmp.eq.s32.totalorder %v73, %v85
    %v90 = vsel %vm86, %v40, 0.0
    %v91 = vsel %vm87, %v41, 0.0
    %v92 = vsel %vm88, %v42, 0.0
    %v93 = vsel %vm89, %v43, 0.0
    %v94 = vsel %vm27, %v90, 0.0
    %95 = vadd.xlane.f32.xlu0 %v94
    %v96 = vpop.xlane.xlu0 %95
    %v97 = vsel %vm27, %v91, 0.0
    %98 = vadd.xlane.f32.xlu0 %v97
    %v99 = vpop.xlane.xlu0 %98
    %v100 = vsel %vm27, %v92, 0.0
    %101 = vadd.xlane.f32.xlu0 %v100
    %v102 = vpop.xlane.xlu0 %101
    %v103 = vsel %vm27, %v93, 0.0
    %104 = vadd.xlane.f32.xlu0 %v103
    %v105 = vpop.xlane.xlu0 %104
    %v106 = vlaneseq
    %v107 = vshrl.u32 %v106, 7
    %v108 = vadd.s32 %v107, 8
    %v109 = vadd.s32 %v107, 16
    %v110 = vadd.s32 %v107, 24
    %v111 = vstv %s21
    %v112 = vadd.s32 %v107, %v111
    %v113 = vadd.s32 %v108, %v111
    %v114 = vadd.s32 %v109, %v111
    %v115 = vadd.s32 %v110, %v111
    %vm116 = vcmp.lt.s32.totalorder %v112, 30
    %vm117 = vcmp.lt.s32.totalorder %v113, 30
    %vm118 = vcmp.lt.s32.totalorder %v114, 30
    %vm119 = vcmp.lt.s32.totalorder %v115, 30
    %v120 = vsub.f32 %v65, %v96
    %v121 = vsub.f32 %v67, %v99
    %v122 = vsub.f32 %v69, %v102
    %v123 = vsub.f32 %v71, %v105
    %v124 = vsel %vm116, %v120, 0.0
    %v125 = vsel %vm117, %v121, 0.0
    %v126 = vsel %vm118, %v122, 0.0
    %v127 = vsel %vm119, %v123, 0.0
    %vm128 = vcmask 7168
    %v129 = vsel %vm128, %v124, 0.0
    %v130 = vsel %vm128, %v125, 0.0
    %v131 = vadd.f32 %v129, %v130
    %v132 = vsel %vm128, %v126, 0.0
    %v133 = vadd.f32 %v131, %v132
    %v134 = vsel %vm128, %v127, 0.0
    %v135 = vadd.f32 %v133, %v134
    %136 = vadd.xlane.f32.xlu0 %v135
    %v137 = vpop.xlane.xlu0 %136
    %v138 = vrot.slane %v137, 4
    %v139 = vadd.f32 %v137, %v138
    %v140 = vrot.slane %v139, 2
    %v141 = vadd.f32 %v139, %v140
    %v142 = vrot.slane %v141, 1
    %v143 = vadd.f32 %v141, %v142
    %s144 = vtos %v143
    %v145 = vld [vmem:[#allocation2] sm:$0x1]
    %v146 = vrcp.pop 30.0
    %s147 = vtos %v146
    %s148 = smul.f32 %s144, %s147
    %v149 = vstv %s148
    %v150 = vadd.f32 %v145, %v149
    %151 = vst [vmem:[#allocation2] sm:$0x1] %v150
    // Predicated region
    $region14: #{tpu_custom_call.1} parent=1 // pred_check
      %p152 = pneg %p12
    $region15: #{tpu_custom_call.1} parent=1 // pred_check_branch
      %154 = sbr.rel (%p152) target = $region17
    $region16: #{tpu_custom_call.1} parent=1 // pred_region
      %v155 = vld [vmem:[#allocation2] sm:$0x1]
      %156 = vst [vmem:[#allocation3] sm:$0x1] %v155
    $region17: #{tpu_custom_call.1} parent=1 // pred_fallthru
      _
    // Predicated region
    $region18: #{tpu_custom_call.1} parent=1 // pred_check
      _
    $region19: #{tpu_custom_call.1} parent=1 // pred_check_branch
      %158 = sbr.rel (0) target = $region21
    $region20: #{tpu_custom_call.1} parent=1 // pred_region
      %s160 = ssub.s32 16, 16
      %161 = vsyncadd [#allocation4], %s160
      %s163 = sshll.u32 [#allocation3], 4
      %s164 = int_to_ptr.vmem [resolvable:$true] %s163
      %166 = dma.vmem_to_hbm [thread:$0]  %s164, 16, %s2, [#allocation4]
    $region21: #{tpu_custom_call.1} parent=1 // pred_fallthru
      _
    // Predicated region
    $region22: #{tpu_custom_call.1} parent=1 // pred_check
      _
    $region23: #{tpu_custom_call.1} parent=1 // pred_check_branch
      %168 = sbr.rel (0) target = $region25
    $region24: #{tpu_custom_call.1} parent=1 // pred_region
      %169 = dma.done [#allocation4], 16
    $region25: #{tpu_custom_call.1} parent=1 // pred_fallthru
      _
    %170 = vsyncpa [#allocation4], 1

</llo_original>
